<compile_context>
chip_gen: v6e
topology: v6e:2x2x1
jax: 0.10.0
libtpu: 0.0.40
codegen_flags: <defaults>
</compile_context>

<pallas_src>
import functools

import jax
import jax.numpy as jnp
from jax import lax
from jax.experimental import pallas as pl
from jax.experimental.pallas import tpu as pltpu


def _round_up(x, m):
    return ((x + m - 1) // m) * m


# --------------------------------------------------------------------------
# Fused kernel: accumulate img_emb = x @ w over K, then (on last K step)
# compute the cosine direction loss and optional MAE distance loss.
# --------------------------------------------------------------------------
def _clip_loss_kernel(x_ref, w_ref, src_img_ref, src_txt_ref, tar_txt_ref,
                      out_ref, acc_ref, *, batch, emb_dim, tk,
                      compute_distance):
    k = pl.program_id(0)

    @pl.when(k == 0)
    def _():
        acc_ref[...] = jnp.zeros_like(acc_ref)
        out_ref[...] = jnp.zeros_like(out_ref)

    # x is resident in VMEM; slice the current K window (aligned, multiple of 128).
    start = pl.multiple_of(k * tk, 128)
    x_blk = x_ref[:, pl.ds(start, tk)]                       # [B_pad, tk] bf16
    acc_ref[...] += jnp.dot(x_blk, w_ref[...],
                            preferred_element_type=jnp.float32)

    @pl.when(k == pl.num_programs(0) - 1)
    def _():
        img_emb = acc_ref[...]                               # [B_pad, D_pad] f32
        src_emb = src_img_ref[...]                           # [B_pad, D_pad]
        img_dir = img_emb - src_emb                          # [B_pad, D_pad]
        txt_dir = tar_txt_ref[...] - src_txt_ref[...]        # [1, D_pad]

        eps = jnp.float32(1e-8)   # torch cosine_similarity default

        # mask rows beyond the real batch (batch was padded to sublane height)
        row = lax.broadcasted_iota(jnp.int32, (img_emb.shape[0], 1), 0)
        valid = (row < batch).astype(jnp.float32)            # [B_pad, 1]

        dot = jnp.sum(img_dir * txt_dir, axis=-1, keepdims=True)     # [B_pad,1]
        img_sq = jnp.sum(img_dir * img_dir, axis=-1, keepdims=True)  # [B_pad,1]
        txt_sq = jnp.sum(txt_dir * txt_dir, axis=-1, keepdims=True)  # [1,1]
        # cos = dot / (max(|a|,eps) * max(|b|,eps)); rsqrt(max(sq,eps^2)) == 1/max(|.|,eps)
        cos = dot * lax.rsqrt(jnp.maximum(img_sq, eps * eps)) \
                  * lax.rsqrt(jnp.maximum(txt_sq, eps * eps))        # [B_pad,1]

        dir_loss = jnp.sum((1.0 - cos) * valid, axis=0, keepdims=True) \
            * jnp.float32(1.0 / batch)                               # [1,1]

        lane = lax.broadcasted_iota(jnp.int32, out_ref.shape, 1)     # [1,128]
        result = jnp.where(lane == 0, dir_loss, jnp.float32(0.0))

        if compute_distance:   # static python flag: traced away when False
            abs_diff = jnp.abs(img_emb - src_emb) * valid            # [B_pad,D_pad]
            dist = jnp.sum(jnp.sum(abs_diff, axis=-1, keepdims=True),
                           axis=0, keepdims=True) \
                * jnp.float32(1.0 / (batch * emb_dim))               # [1,1]
            result = jnp.where(lane == 1, dist, result)

        out_ref[...] = result


# --------------------------------------------------------------------------
# Factory: pad/cast the constant parameters ONCE, return a jitted forward.
# --------------------------------------------------------------------------
def make_clip_loss_fn(w_embed, src_img_emb, src_txt_emb, tar_txt_emb,
                      use_distance=False, distance_lambda=1.0, tk_max=8192):
    F, D = w_embed.shape
    B = src_img_emb.shape[0]

    # ---- padded shapes / K tiling -----------------------------------------
    B_pad = _round_up(max(B, 16), 16)          # bf16: 2 rows / sublane
    D_pad = _round_up(D, 128)                  # lane width
    tk = _round_up(min(tk_max, F), 128)        # ~2 MiB bf16 weight per step @ D_pad=128
    n_k = pl.cdiv(F, tk)
    F_pad = n_k * tk

    # ---- one-time (hoisted) pad/cast of constant parameters ---------------
    w_p = jnp.zeros((F_pad, D_pad), jnp.bfloat16).at[:F, :D].set(
        w_embed.astype(jnp.bfloat16))
    src_img_p = jnp.zeros((B_pad, D_pad), jnp.float32).at[:B, :D].set(
        src_img_emb.astype(jnp.float32))
    src_txt_p = jnp.zeros((1, D_pad), jnp.float32).at[:, :D].set(
        src_txt_emb.astype(jnp.float32))
    tar_txt_p = jnp.zeros((1, D_pad), jnp.float32).at[:, :D].set(
        tar_txt_emb.astype(jnp.float32))

    # ---- VMEM budget (keep <= 48 MiB headroom for v7x's 64 MiB) -----------
    vmem_bytes = (B_pad * F_pad * 2            # resident x (bf16)
                  + 2 * tk * D_pad * 2         # double-buffered w tiles
                  + B_pad * D_pad * 4          # src_img
                  + 2 * 8 * D_pad * 4          # src_txt / tar_txt (sublane-padded)
                  + B_pad * D_pad * 4          # f32 accumulator scratch
                  + 2 * 8 * 128 * 4)           # loss output
    vmem_limit = int(min(max(2 * vmem_bytes, 32 * 1024 * 1024),
                         48 * 1024 * 1024))

    kernel = functools.partial(_clip_loss_kernel, batch=B, emb_dim=D, tk=tk,
                               compute_distance=bool(use_distance))

    bytes_accessed = (B_pad * F_pad + F_pad * D_pad) * 2 + 128 * 4
    call = pl.pallas_call(
        kernel,
        out_shape=jax.ShapeDtypeStruct((1, 128), jnp.float32),
        grid_spec=pltpu.PrefetchScalarGridSpec(
            num_scalar_prefetch=0,
            grid=(n_k,),                                        # reduction over K only
            in_specs=[
                pl.BlockSpec((B_pad, F_pad), lambda k: (0, 0)),  # x: resident
                pl.BlockSpec((tk, D_pad), lambda k: (k, 0)),     # w: streamed over K
                pl.BlockSpec((B_pad, D_pad), lambda k: (0, 0)),  # src_img: resident
                pl.BlockSpec((1, D_pad), lambda k: (0, 0)),      # src_txt: resident
                pl.BlockSpec((1, D_pad), lambda k: (0, 0)),      # tar_txt: resident
            ],
            out_specs=pl.BlockSpec((1, 128), lambda k: (0, 0)),
            scratch_shapes=[pltpu.VMEM((B_pad, D_pad), jnp.float32)],
        ),
        # NOTE: on v7x one could add a 2-way CORE_PARALLEL split of the K range
        # (or pl.Buffered(3) on the weight stream) if the DMA is still exposed.
        compiler_params=pltpu.CompilerParams(
            dimension_semantics=("arbitrary",),
            vmem_limit_bytes=vmem_limit),
        cost_estimate=pl.CostEstimate(
            flops=2 * B_pad * F_pad * D_pad,
            transcendentals=0,
            bytes_accessed=bytes_accessed),
    )

    def forward(x_nchw):
        Bx = x_nchw.shape[0]
        assert Bx == B, "batch must match src_img_emb batch"
        x_flat = x_nchw.reshape(Bx, -1)
        assert x_flat.shape[1] == F
        # Per-call glue: only the small x input is padded/cast per call.
        x_p = jnp.zeros((B_pad, F_pad), jnp.bfloat16).at[:Bx, :F].set(
            x_flat.astype(jnp.bfloat16))
        out = call(x_p, w_p, src_img_p, src_txt_p, tar_txt_p)
        dir_loss = out[0, 0]
        dist_loss = out[0, 1] if use_distance else jnp.float32(0.0)
        loss = dir_loss
        if use_distance:
            loss = loss + jnp.float32(distance_lambda) * dist_loss
        return loss, dir_loss, dist_loss

    return jax.jit(forward)


# --------------------------------------------------------------------------
# Pure-JAX reference for correctness checking (same bf16 inputs, f32 acc)
# --------------------------------------------------------------------------
def _clip_loss_ref(x_nchw, w_embed, src_img_emb, src_txt_emb, tar_txt_emb,
                   use_distance, distance_lambda):
    B = x_nchw.shape[0]
    x_flat = x_nchw.reshape(B, -1).astype(jnp.bfloat16)
    img_emb = jnp.dot(x_flat, w_embed.astype(jnp.bfloat16),
                      preferred_element_type=jnp.float32)
    img_dir = img_emb - src_img_emb
    txt_dir = tar_txt_emb - src_txt_emb
    eps = 1e-8
    cos = jnp.sum(img_dir * txt_dir, -1) / (
        jnp.maximum(jnp.linalg.norm(img_dir, axis=-1), eps) *
        jnp.maximum(jnp.linalg.norm(txt_dir, axis=-1), eps))
    dir_loss = jnp.mean(1.0 - cos)
    dist_loss = jnp.mean(jnp.abs(img_emb - src_img_emb))
    loss = dir_loss + (distance_lambda * dist_loss if use_distance else 0.0)
    return loss, dir_loss, dist_loss


if __name__ == "__main__":
    # Small, deterministic synthetic setup.
    B, C, H, W = 2, 4, 16, 16     # image batch (NCHW)
    F = C * H * W                 # 1024 flattened features
    D = 128                       # CLIP-style embedding dim

    key = jax.random.PRNGKey(0)
    k_x, k_w, k_src_img, k_src_txt, k_tar_txt = jax.random.split(key, 5)

    x = jax.random.normal(k_x, (B, C, H, W), dtype=jnp.float32)

    # Deterministic "encoder" / embedding parameters (synthetic, no checkpoint).
    w_embed = jax.random.normal(k_w, (F, D), dtype=jnp.float32) / jnp.sqrt(F)
    src_img_emb = jax.random.normal(k_src_img, (B, D), dtype=jnp.float32)
    src_txt_emb = jax.random.normal(k_src_txt, (1, D), dtype=jnp.float32)
    tar_txt_emb = jax.random.normal(k_tar_txt, (1, D), dtype=jnp.float32)

    ok = True
    for use_distance in (False, True):
        fwd = make_clip_loss_fn(w_embed, src_img_emb, src_txt_emb, tar_txt_emb,
                                use_distance=use_distance, distance_lambda=1.0)
        loss, dir_loss, dist_loss = fwd(x)
        jax.block_until_ready((loss, dir_loss, dist_loss))

        r_loss, r_dir, r_dist = _clip_loss_ref(
            x, w_embed, src_img_emb, src_txt_emb, tar_txt_emb,
            use_distance, 1.0)
        ok &= bool(jnp.allclose(dir_loss, r_dir, rtol=5e-2, atol=5e-2))
        ok &= bool(jnp.allclose(loss, r_loss, rtol=5e-2, atol=5e-2))
        if use_distance:
            ok &= bool(jnp.allclose(dist_loss, r_dist, rtol=5e-2, atol=5e-2))

    if ok:
        print("KERNEL_OK")
    else:
        print("KERNEL_MISMATCH")
</pallas_src>

<mosaic_0001>
module attributes {stable_mosaic.version = 11 : i64} {
  func.func @_clip_loss_kernel(%arg0: i32, %arg1: memref<16x1024xbf16, #tpu.memory_space<vmem>>, %arg2: memref<1024x128xbf16, #tpu.memory_space<vmem>>, %arg3: memref<16x128xf32, #tpu.memory_space<vmem>>, %arg4: memref<1x128xf32, #tpu.memory_space<vmem>>, %arg5: memref<1x128xf32, #tpu.memory_space<vmem>>, %arg6: memref<1x128xf32, #tpu.memory_space<vmem>>, %arg7: memref<16x128xf32, #tpu.memory_space<vmem>>) attributes {dimension_semantics = [#tpu.dimension_semantics<arbitrary>], iteration_bounds = array<i64: 1>, scalar_prefetch = 0 : i64, scratch_operands = 1 : i64, tpu.core_type = #tpu.core_type<tc>, window_params = [{pipeline_mode = #tpu.pipeline_mode<synchronous>, transform_indices = @transform_0, window_bounds = array<i64: 16, 1024>}, {transform_indices = @transform_1, window_bounds = array<i64: 1024, 128>}, {pipeline_mode = #tpu.pipeline_mode<synchronous>, transform_indices = @transform_2, window_bounds = array<i64: 16, 128>}, {pipeline_mode = #tpu.pipeline_mode<synchronous>, transform_indices = @transform_3, window_bounds = array<i64: 1, 128>}, {pipeline_mode = #tpu.pipeline_mode<synchronous>, transform_indices = @transform_4, window_bounds = array<i64: 1, 128>}, {pipeline_mode = #tpu.pipeline_mode<synchronous>, transform_indices = @transform_5, window_bounds = array<i64: 1, 128>}]} {
    %c0_i32 = arith.constant 0 : i32
    %0 = arith.cmpi eq, %arg0, %c0_i32 : i32
    %1 = arith.extui %0 : i1 to i32
    %c0_i32_0 = arith.constant 0 : i32
    %2 = arith.cmpi ne, %1, %c0_i32_0 : i32
    scf.if %2 {
      %cst_9 = arith.constant 0.000000e+00 : f32
      %15 = vector.broadcast %cst_9 : f32 to vector<16x128xf32>
      %c0_10 = arith.constant 0 : index
      %c0_11 = arith.constant 0 : index
      %16 = vector.load %arg7[%c0_10, %c0_11] : memref<16x128xf32, #tpu.memory_space<vmem>>, vector<16x128xf32>
      tpu.vector_store %arg7[%c0_10, %c0_11], %15 {strides = array<i32>} : memref<16x128xf32, #tpu.memory_space<vmem>>, vector<16x128xf32>,
      %cst_12 = arith.constant 0.000000e+00 : f32
      %17 = vector.broadcast %cst_12 : f32 to vector<1x128xf32>
      %c0_13 = arith.constant 0 : index
      %c0_14 = arith.constant 0 : index
      %18 = vector.load %arg6[%c0_13, %c0_14] : memref<1x128xf32, #tpu.memory_space<vmem>>, vector<1x128xf32>
      tpu.vector_store %arg6[%c0_13, %c0_14], %17 {strides = array<i32>} : memref<1x128xf32, #tpu.memory_space<vmem>>, vector<1x128xf32>,
    } else {
    }
    %c1024_i32 = arith.constant 1024 : i32
    %3 = arith.muli %arg0, %c1024_i32 : i32
    %4 = tpu.assume_multiple %3, 128 : i32
    %c0 = arith.constant 0 : index
    %5 = arith.index_cast %4 : i32 to index
    %6 = vector.load %arg1[%c0, %5] : memref<16x1024xbf16, #tpu.memory_space<vmem>>, vector<16x1024xbf16>
    %c0_1 = arith.constant 0 : index
    %c0_2 = arith.constant 0 : index
    %7 = vector.load %arg7[%c0_1, %c0_2] : memref<16x128xf32, #tpu.memory_space<vmem>>, vector<16x128xf32>
    %c0_3 = arith.constant 0 : index
    %c0_4 = arith.constant 0 : index
    %8 = vector.load %arg2[%c0_3, %c0_4] : memref<1024x128xbf16, #tpu.memory_space<vmem>>, vector<1024x128xbf16>
    %cst = arith.constant dense<0.000000e+00> : vector<16x128xf32>
    %9 = tpu.matmul %6, %8, %cst {dimension_numbers = #tpu.dot_dimension_numbers<[1], [0], [0], [1], [0, 0, 1, 1], [], []>} : vector<16x1024xbf16>, vector<1024x128xbf16>, vector<16x128xf32> -> vector<16x128xf32>
    %10 = arith.addf %7, %9 : vector<16x128xf32>
    %c0_5 = arith.constant 0 : index
    %c0_6 = arith.constant 0 : index
    %11 = vector.load %arg7[%c0_5, %c0_6] : memref<16x128xf32, #tpu.memory_space<vmem>>, vector<16x128xf32>
    tpu.vector_store %arg7[%c0_5, %c0_6], %10 {strides = array<i32>} : memref<16x128xf32, #tpu.memory_space<vmem>>, vector<16x128xf32>,
    %c0_i32_7 = arith.constant 0 : i32
    %12 = arith.cmpi eq, %arg0, %c0_i32_7 : i32
    %13 = arith.extui %12 : i1 to i32
    %c0_i32_8 = arith.constant 0 : i32
    %14 = arith.cmpi ne, %13, %c0_i32_8 : i32
    scf.if %14 {
      %c0_9 = arith.constant 0 : index
      %c0_10 = arith.constant 0 : index
      %15 = vector.load %arg7[%c0_9, %c0_10] : memref<16x128xf32, #tpu.memory_space<vmem>>, vector<16x128xf32>
      %c0_11 = arith.constant 0 : index
      %c0_12 = arith.constant 0 : index
      %16 = vector.load %arg3[%c0_11, %c0_12] : memref<16x128xf32, #tpu.memory_space<vmem>>, vector<16x128xf32>
      %17 = arith.subf %15, %16 : vector<16x128xf32>
      %c0_13 = arith.constant 0 : index
      %c0_14 = arith.constant 0 : index
      %18 = vector.load %arg5[%c0_13, %c0_14] : memref<1x128xf32, #tpu.memory_space<vmem>>, vector<1x128xf32>
      %c0_15 = arith.constant 0 : index
      %c0_16 = arith.constant 0 : index
      %19 = vector.load %arg4[%c0_15, %c0_16] : memref<1x128xf32, #tpu.memory_space<vmem>>, vector<1x128xf32>
      %20 = arith.subf %18, %19 : vector<1x128xf32>
      %21 = tpu.iota {dimensions = array<i32: 0>} : vector<16x1xi32>
      %c2_i32 = arith.constant 2 : i32
      %22 = vector.broadcast %c2_i32 : i32 to vector<16x1xi32>
      %23 = arith.cmpi slt, %21, %22 : vector<16x1xi32>
      %24 = arith.extui %23 : vector<16x1xi1> to vector<16x1xi32>
      %25 = arith.sitofp %24 : vector<16x1xi32> to vector<16x1xf32>
      %26 = vector.broadcast %20 : vector<1x128xf32> to vector<16x128xf32>
      %27 = arith.mulf %17, %26 : vector<16x128xf32>
      %cst_17 = arith.constant dense<0.000000e+00> : vector<16xf32>
      %28 = vector.multi_reduction <add>, %27, %cst_17 [1] : vector<16x128xf32> to vector<16xf32>
      %29 = vector.shape_cast %28 : vector<16xf32> to vector<16x1xf32>
      %30 = arith.mulf %17, %17 : vector<16x128xf32>
      %cst_18 = arith.constant dense<0.000000e+00> : vector<16xf32>
      %31 = vector.multi_reduction <add>, %30, %cst_18 [1] : vector<16x128xf32> to vector<16xf32>
      %32 = vector.shape_cast %31 : vector<16xf32> to vector<16x1xf32>
      %33 = arith.mulf %20, %20 : vector<1x128xf32>
      %cst_19 = arith.constant dense<0.000000e+00> : vector<1xf32>
      %34 = vector.multi_reduction <add>, %33, %cst_19 [1] : vector<1x128xf32> to vector<1xf32>
      %35 = vector.shape_cast %34 : vector<1xf32> to vector<1x1xf32>
      %cst_20 = arith.constant 9.99999993E-9 : f32
      %cst_21 = arith.constant 9.99999993E-9 : f32
      %36 = arith.mulf %cst_20, %cst_21 : f32
      %37 = vector.broadcast %36 : f32 to vector<16x1xf32>
      %38 = arith.maximumf %32, %37 : vector<16x1xf32>
      %39 = math.rsqrt %38 : vector<16x1xf32>
      %40 = arith.mulf %29, %39 : vector<16x1xf32>
      %cst_22 = arith.constant 9.99999993E-9 : f32
      %cst_23 = arith.constant 9.99999993E-9 : f32
      %41 = arith.mulf %cst_22, %cst_23 : f32
      %42 = vector.broadcast %41 : f32 to vector<1x1xf32>
      %43 = arith.maximumf %35, %42 : vector<1x1xf32>
      %44 = math.rsqrt %43 : vector<1x1xf32>
      %45 = vector.broadcast %44 : vector<1x1xf32> to vector<16x1xf32>
      %46 = arith.mulf %40, %45 : vector<16x1xf32>
      %cst_24 = arith.constant 1.000000e+00 : f32
      %47 = vector.broadcast %cst_24 : f32 to vector<16x1xf32>
      %48 = arith.subf %47, %46 : vector<16x1xf32>
      %49 = arith.mulf %48, %25 : vector<16x1xf32>
      %cst_25 = arith.constant dense<0.000000e+00> : vector<1xf32>
      %50 = vector.multi_reduction <add>, %49, %cst_25 [0] : vector<16x1xf32> to vector<1xf32>
      %51 = vector.shape_cast %50 : vector<1xf32> to vector<1x1xf32>
      %cst_26 = arith.constant 5.000000e-01 : f32
      %52 = vector.broadcast %cst_26 : f32 to vector<1x1xf32>
      %53 = arith.mulf %51, %52 : vector<1x1xf32>
      %54 = tpu.iota {dimensions = array<i32: 1>} : vector<1x128xi32>
      %c0_i32_27 = arith.constant 0 : i32
      %55 = vector.broadcast %c0_i32_27 : i32 to vector<1x128xi32>
      %56 = arith.cmpi eq, %54, %55 : vector<1x128xi32>
      %cst_28 = arith.constant 0.000000e+00 : f32
      %57 = vector.shape_cast %53 : vector<1x1xf32> to vector<1x1xf32>
      %58 = vector.broadcast %57 : vector<1x1xf32> to vector<1x128xf32>
      %59 = vector.broadcast %cst_28 : f32 to vector<1x128xf32>
      %60 = arith.select %56, %58, %59 : vector<1x128xi1>, vector<1x128xf32>
      %c0_29 = arith.constant 0 : index
      %c0_30 = arith.constant 0 : index
      %61 = vector.load %arg6[%c0_29, %c0_30] : memref<1x128xf32, #tpu.memory_space<vmem>>, vector<1x128xf32>
      tpu.vector_store %arg6[%c0_29, %c0_30], %60 {strides = array<i32>} : memref<1x128xf32, #tpu.memory_space<vmem>>, vector<1x128xf32>,
    } else {
    }
    return
  }
  func.func @transform_0(%arg0: i32) -> (i32, i32) {
    %c0_i32 = arith.constant 0 : i32
    %c0_i32_0 = arith.constant 0 : i32
    %c0_i32_1 = arith.constant 0 : i32
    return %c0_i32, %c0_i32_0 : i32, i32
  }
  func.func @transform_1(%arg0: i32) -> (i32, i32) {
    %c0_i32 = arith.constant 0 : i32
    %c0_i32_0 = arith.constant 0 : i32
    return %arg0, %c0_i32 : i32, i32
  }
  func.func @transform_2(%arg0: i32) -> (i32, i32) {
    %c0_i32 = arith.constant 0 : i32
    %c0_i32_0 = arith.constant 0 : i32
    %c0_i32_1 = arith.constant 0 : i32
    return %c0_i32, %c0_i32_0 : i32, i32
  }
  func.func @transform_3(%arg0: i32) -> (i32, i32) {
    %c0_i32 = arith.constant 0 : i32
    %c0_i32_0 = arith.constant 0 : i32
    %c0_i32_1 = arith.constant 0 : i32
    return %c0_i32, %c0_i32_0 : i32, i32
  }
  func.func @transform_4(%arg0: i32) -> (i32, i32) {
    %c0_i32 = arith.constant 0 : i32
    %c0_i32_0 = arith.constant 0 : i32
    %c0_i32_1 = arith.constant 0 : i32
    return %c0_i32, %c0_i32_0 : i32, i32
  }
  func.func @transform_5(%arg0: i32) -> (i32, i32) {
    %c0_i32 = arith.constant 0 : i32
    %c0_i32_0 = arith.constant 0 : i32
    %c0_i32_1 = arith.constant 0 : i32
    return %c0_i32, %c0_i32_0 : i32, i32
  }
}

</mosaic_0001>

<llo_original>
// kernel: forward.1
$region0: #{forward.1}
  #allocation0 [shape = 'u32[]', space=smem, size = 0x4, offset = 0x4, fixed_abs, tag = 'smem constant byte address 0x4 - core index']
  #allocation1 [shape = 'u32[144,128]{1,0:T(1,128)}', space=vmem, size = 0x12000, scoped, tag = 'internal scratch']
  #allocation2 [shape = 'f32[16,128]{1,0:T(8,128)}', space=vmem, size = 0x2000, scoped, tag = 'scratch operand']
  %s0 = inlined_call_operand.vmem [shape: bf16[16,1024], index: 0, kind: input, shape index: {}]
  %s1 = inlined_call_operand.hbm [shape: bf16[1024,128], index: 1, kind: input, shape index: {}]
  %s2 = inlined_call_operand.vmem [shape: f32[16,128], index: 2, kind: input, shape index: {}]
  %s3 = inlined_call_operand.vmem [shape: f32[1,128], index: 3, kind: input, shape index: {}]
  %s4 = inlined_call_operand.vmem [shape: f32[1,128], index: 4, kind: input, shape index: {}]
  %s5 = inlined_call_operand.vmem [shape: f32[1,128], index: 5, kind: output, shape index: {}]
  %s6 = sld [smem:[#allocation0]]
  $region42: #{forward.1} parent=0
    _
  %s8 = ssub.s32 1, %s6
  %s9 = scalar_select 0, %s8, %s6
  $region1: #{forward.1} parent=0
    #allocation3 [shape = 'u8[262144]{0}', space=vmem, size = 0x40000, scoped, tag = 'input window, operand 1, single buffered']
    #allocation4 [shape = 's32[1]{0}', space=sflag, size = 0x4, scoped, tag = 'scoped memory for forward.1']
    %10 = vsyncpa [#allocation4], 0
    // Predicated region
    $region2: #{forward.1} parent=1 // pred_check
      _
    $region3: #{forward.1} parent=1 // pred_check_branch
      %12 = sbr.rel (0) target = $region5
    $region4: #{forward.1} parent=1 // pred_region
      _
    $region5: #{forward.1} parent=1 // pred_fallthru
      _
    // Predicated region
    $region6: #{forward.1} parent=1 // pred_check
      _
    $region7: #{forward.1} parent=1 // pred_check_branch
      %14 = sbr.rel (0) target = $region9
    $region8: #{forward.1} parent=1 // pred_region
      %s16 = ssub.s32 8192, 8192
      %17 = vsyncadd [#allocation4], %s16
      %s18 = sshll.u32 [#allocation3], 4
      %s19 = int_to_ptr.vmem [resolvable:$true] %s18
      %24 = dma.hbm_to_vmem [thread:$0]  %s1, 8192, %s19, [#allocation4], 64, 64, 4
    $region9: #{forward.1} parent=1 // pred_fallthru
      _
    // Predicated region
    $region10: #{forward.1} parent=1 // pred_check
      _
    $region11: #{forward.1} parent=1 // pred_check_branch
      %26 = sbr.rel (0) target = $region13
    $region12: #{forward.1} parent=1 // pred_region
      _
    $region13: #{forward.1} parent=1 // pred_fallthru
      _
    // Predicated region
    $region14: #{forward.1} parent=1 // pred_check
      _
    $region15: #{forward.1} parent=1 // pred_check_branch
      %28 = sbr.rel (0) target = $region17
    $region16: #{forward.1} parent=1 // pred_region
      _
    $region17: #{forward.1} parent=1 // pred_fallthru
      _
    // Predicated region
    $region18: #{forward.1} parent=1 // pred_check
      _
    $region19: #{forward.1} parent=1 // pred_check_branch
      %30 = sbr.rel (0) target = $region21
    $region20: #{forward.1} parent=1 // pred_region
      _
    $region21: #{forward.1} parent=1 // pred_fallthru
      _
    // Predicated region
    $region22: #{forward.1} parent=1 // pred_check
      _
    $region23: #{forward.1} parent=1 // pred_check_branch
      %32 = sbr.rel (0) target = $region25
    $region24: #{forward.1} parent=1 // pred_region
      %33 = dma.done [#allocation4], 8192
    $region25: #{forward.1} parent=1 // pred_fallthru
      _
    %p35 = scmp.eq.s32.totalorder 0, 0
    // Predicated region
    $region26: #{forward.1} parent=1 // pred_check
      %p36 = pneg %p35
    $region27: #{forward.1} parent=1 // pred_check_branch
      %38 = sbr.rel (%p36) target = $region29
    $region28: #{forward.1} parent=1 // pred_region
      %39 = vst [vmem:[#allocation2] sm:$0xff] 0.0
      %40 = vst [vmem:[#allocation2 + $0x8] sm:$0xff] 0.0
      %41 = vst [vmem:[%s5] sm:$0x1] 0.0
    $region29: #{forward.1} parent=1 // pred_fallthru
      _
    %s42 = smul.u32 0, 1024
    %s43 = sshra.s32 %s42, 7
    %s44 = sand.u32 %s42, 127
    %s45 = smul.addr %s43, 4
    %s46 = scalar_lea.vmem %s0, %s45
    %v47 = vld [vmem:[%s46] sm:$0xff]
    %v48 = vld [vmem:[%s46 + $0x8] sm:$0xff]
    %v49 = vld [vmem:[%s46 + $0x10] sm:$0xff]
    %v50 = vld [vmem:[%s46 + $0x18] sm:$0xff]
    %v51 = vld [vmem:[%s46 + $0x20] sm:$0xff]
    %v52 = vld [vmem:[%s46 + $0x28] sm:$0xff]
    %v53 = vld [vmem:[%s46 + $0x30] sm:$0xff]
    %v54 = vld [vmem:[%s46 + $0x38] sm:$0xff]
    %v55 = vld [vmem:[#allocation2] sm:$0xff]
    %v56 = vld [vmem:[#allocation2 + $0x8] sm:$0xff]
    %v57 = vld [vmem:[#allocation3] sm:$0xf]
    %v58 = vld [vmem:[#allocation3 + $0x4] sm:$0xf]
    %v59 = vld [vmem:[#allocation3 + $0x8] sm:$0xf]
    %v60 = vld [vmem:[#allocation3 + $0xc] sm:$0xf]
    %v61 = vld [vmem:[#allocation3 + $0x10] sm:$0xf]
    %v62 = vld [vmem:[#allocation3 + $0x14] sm:$0xf]
    %v63 = vld [vmem:[#allocation3 + $0x18] sm:$0xf]
    %v64 = vld [vmem:[#allocation3 + $0x1c] sm:$0xf]
    %v65 = vld [vmem:[#allocation3 + $0x20] sm:$0xf]
    %v66 = vld [vmem:[#allocation3 + $0x24] sm:$0xf]
    %v67 = vld [vmem:[#allocation3 + $0x28] sm:$0xf]
    %v68 = vld [vmem:[#allocation3 + $0x2c] sm:$0xf]
    %v69 = vld [vmem:[#allocation3 + $0x30] sm:$0xf]
    %v70 = vld [vmem:[#allocation3 + $0x34] sm:$0xf]
    %v71 = vld [vmem:[#allocation3 + $0x38] sm:$0xf]
    %v72 = vld [vmem:[#allocation3 + $0x3c] sm:$0xf]
    %v73 = vld [vmem:[#allocation3 + $0x40] sm:$0xf]
    %v74 = vld [vmem:[#allocation3 + $0x44] sm:$0xf]
    %v75 = vld [vmem:[#allocation3 + $0x48] sm:$0xf]
    %v76 = vld [vmem:[#allocation3 + $0x4c] sm:$0xf]
    %v77 = vld [vmem:[#allocation3 + $0x50] sm:$0xf]
    %v78 = vld [vmem:[#allocation3 + $0x54] sm:$0xf]
    %v79 = vld [vmem:[#allocation3 + $0x58] sm:$0xf]
    %v80 = vld [vmem:[#allocation3 + $0x5c] sm:$0xf]
    %v81 = vld [vmem:[#allocation3 + $0x60] sm:$0xf]
    %v82 = vld [vmem:[#allocation3 + $0x64] sm:$0xf]
    %v83 = vld [vmem:[#allocation3 + $0x68] sm:$0xf]
    %v84 = vld [vmem:[#allocation3 + $0x6c] sm:$0xf]
    %v85 = vld [vmem:[#allocation3 + $0x70] sm:$0xf]
    %v86 = vld [vmem:[#allocation3 + $0x74] sm:$0xf]
    %v87 = vld [vmem:[#allocation3 + $0x78] sm:$0xf]
    %v88 = vld [vmem:[#allocation3 + $0x7c] sm:$0xf]
    %v89 = vld [vmem:[#allocation3 + $0x80] sm:$0xf]
    %v90 = vld [vmem:[#allocation3 + $0x84] sm:$0xf]
    %v91 = vld [vmem:[#allocation3 + $0x88] sm:$0xf]
    %v92 = vld [vmem:[#allocation3 + $0x8c] sm:$0xf]
    %v93 = vld [vmem:[#allocation3 + $0x90] sm:$0xf]
    %v94 = vld [vmem:[#allocation3 + $0x94] sm:$0xf]
    %v95 = vld [vmem:[#allocation3 + $0x98] sm:$0xf]
    %v96 = vld [vmem:[#allocation3 + $0x9c] sm:$0xf]
    %v97 = vld [vmem:[#allocation3 + $0xa0] sm:$0xf]
    %v98 = vld [vmem:[#allocation3 + $0xa4] sm:$0xf]
    %v99 = vld [vmem:[#allocation3 + $0xa8] sm:$0xf]
    %v100 = vld [vmem:[#allocation3 + $0xac] sm:$0xf]
    %v101 = vld [vmem:[#allocation3 + $0xb0] sm:$0xf]
    %v102 = vld [vmem:[#allocation3 + $0xb4] sm:$0xf]
    %v103 = vld [vmem:[#allocation3 + $0xb8] sm:$0xf]
    %v104 = vld [vmem:[#allocation3 + $0xbc] sm:$0xf]
    %v105 = vld [vmem:[#allocation3 + $0xc0] sm:$0xf]
    %v106 = vld [vmem:[#allocation3 + $0xc4] sm:$0xf]
    %v107 = vld [vmem:[#allocation3 + $0xc8] sm:$0xf]
    %v108 = vld [vmem:[#allocation3 + $0xcc] sm:$0xf]
    %v109 = vld [vmem:[#allocation3 + $0xd0] sm:$0xf]
    %v110 = vld [vmem:[#allocation3 + $0xd4] sm:$0xf]
    %v111 = vld [vmem:[#allocation3 + $0xd8] sm:$0xf]
    %v112 = vld [vmem:[#allocation3 + $0xdc] sm:$0xf]
    %v113 = vld [vmem:[#allocation3 + $0xe0] sm:$0xf]
    %v114 = vld [vmem:[#allocation3 + $0xe4] sm:$0xf]
    %v115 = vld [vmem:[#allocation3 + $0xe8] sm:$0xf]
    %v116 = vld [vmem:[#allocation3 + $0xec] sm:$0xf]
    %v117 = vld [vmem:[#allocation3 + $0xf0] sm:$0xf]
    %v118 = vld [vmem:[#allocation3 + $0xf4] sm:$0xf]
    %v119 = vld [vmem:[#allocation3 + $0xf8] sm:$0xf]
    %v120 = vld [vmem:[#allocation3 + $0xfc] sm:$0xf]
    %v121 = vld [vmem:[#allocation3 + $0x100] sm:$0xf]
    %v122 = vld [vmem:[#allocation3 + $0x104] sm:$0xf]
    %v123 = vld [vmem:[#allocation3 + $0x108] sm:$0xf]
    %v124 = vld [vmem:[#allocation3 + $0x10c] sm:$0xf]
    %v125 = vld [vmem:[#allocation3 + $0x110] sm:$0xf]
    %v126 = vld [vmem:[#allocation3 + $0x114] sm:$0xf]
    %v127 = vld [vmem:[#allocation3 + $0x118] sm:$0xf]
    %v128 = vld [vmem:[#allocation3 + $0x11c] sm:$0xf]
    %v129 = vld [vmem:[#allocation3 + $0x120] sm:$0xf]
    %v130 = vld [vmem:[#allocation3 + $0x124] sm:$0xf]
    %v131 = vld [vmem:[#allocation3 + $0x128] sm:$0xf]
    %v132 = vld [vmem:[#allocation3 + $0x12c] sm:$0xf]
    %v133 = vld [vmem:[#allocation3 + $0x130] sm:$0xf]
    %v134 = vld [vmem:[#allocation3 + $0x134] sm:$0xf]
    %v135 = vld [vmem:[#allocation3 + $0x138] sm:$0xf]
    %v136 = vld [vmem:[#allocation3 + $0x13c] sm:$0xf]
    %v137 = vld [vmem:[#allocation3 + $0x140] sm:$0xf]
    %v138 = vld [vmem:[#allocation3 + $0x144] sm:$0xf]
    %v139 = vld [vmem:[#allocation3 + $0x148] sm:$0xf]
    %v140 = vld [vmem:[#allocation3 + $0x14c] sm:$0xf]
    %v141 = vld [vmem:[#allocation3 + $0x150] sm:$0xf]
    %v142 = vld [vmem:[#allocation3 + $0x154] sm:$0xf]
    %v143 = vld [vmem:[#allocation3 + $0x158] sm:$0xf]
    %v144 = vld [vmem:[#allocation3 + $0x15c] sm:$0xf]
    %v145 = vld [vmem:[#allocation3 + $0x160] sm:$0xf]
    %v146 = vld [vmem:[#allocation3 + $0x164] sm:$0xf]
    %v147 = vld [vmem:[#allocation3 + $0x168] sm:$0xf]
    %v148 = vld [vmem:[#allocation3 + $0x16c] sm:$0xf]
    %v149 = vld [vmem:[#allocation3 + $0x170] sm:$0xf]
    %v150 = vld [vmem:[#allocation3 + $0x174] sm:$0xf]
    %v151 = vld [vmem:[#allocation3 + $0x178] sm:$0xf]
    %v152 = vld [vmem:[#allocation3 + $0x17c] sm:$0xf]
    %v153 = vld [vmem:[#allocation3 + $0x180] sm:$0xf]
    %v154 = vld [vmem:[#allocation3 + $0x184] sm:$0xf]
    %v155 = vld [vmem:[#allocation3 + $0x188] sm:$0xf]
    %v156 = vld [vmem:[#allocation3 + $0x18c] sm:$0xf]
    %v157 = vld [vmem:[#allocation3 + $0x190] sm:$0xf]
    %v158 = vld [vmem:[#allocation3 + $0x194] sm:$0xf]
    %v159 = vld [vmem:[#allocation3 + $0x198] sm:$0xf]
    %v160 = vld [vmem:[#allocation3 + $0x19c] sm:$0xf]
    %v161 = vld [vmem:[#allocation3 + $0x1a0] sm:$0xf]
    %v162 = vld [vmem:[#allocation3 + $0x1a4] sm:$0xf]
    %v163 = vld [vmem:[#allocation3 + $0x1a8] sm:$0xf]
    %v164 = vld [vmem:[#allocation3 + $0x1ac] sm:$0xf]
    %v165 = vld [vmem:[#allocation3 + $0x1b0] sm:$0xf]
    %v166 = vld [vmem:[#allocation3 + $0x1b4] sm:$0xf]
    %v167 = vld [vmem:[#allocation3 + $0x1b8] sm:$0xf]
    %v168 = vld [vmem:[#allocation3 + $0x1bc] sm:$0xf]
    %v169 = vld [vmem:[#allocation3 + $0x1c0] sm:$0xf]
    %v170 = vld [vmem:[#allocation3 + $0x1c4] sm:$0xf]
    %v171 = vld [vmem:[#allocation3 + $0x1c8] sm:$0xf]
    %v172 = vld [vmem:[#allocation3 + $0x1cc] sm:$0xf]
    %v173 = vld [vmem:[#allocation3 + $0x1d0] sm:$0xf]
    %v174 = vld [vmem:[#allocation3 + $0x1d4] sm:$0xf]
    %v175 = vld [vmem:[#allocation3 + $0x1d8] sm:$0xf]
    %v176 = vld [vmem:[#allocation3 + $0x1dc] sm:$0xf]
    %v177 = vld [vmem:[#allocation3 + $0x1e0] sm:$0xf]
    %v178 = vld [vmem:[#allocation3 + $0x1e4] sm:$0xf]
    %v179 = vld [vmem:[#allocation3 + $0x1e8] sm:$0xf]
    %v180 = vld [vmem:[#allocation3 + $0x1ec] sm:$0xf]
    %v181 = vld [vmem:[#allocation3 + $0x1f0] sm:$0xf]
    %v182 = vld [vmem:[#allocation3 + $0x1f4] sm:$0xf]
    %v183 = vld [vmem:[#allocation3 + $0x1f8] sm:$0xf]
    %v184 = vld [vmem:[#allocation3 + $0x1fc] sm:$0xf]
    %v193 = vunpack.c.l.b16 %v47
    %v194 = vunpack.c.h.b16 %v47
    %v195 = vunpack.c.l.b16 %v48
    %v196 = vunpack.c.h.b16 %v48
    %v197 = vunpack.c.l.b16 %v49
    %v198 = vunpack.c.h.b16 %v49
    %v199 = vunpack.c.l.b16 %v50
    %v200 = vunpack.c.h.b16 %v50
    %v201 = vunpack.c.l.b16 %v51
    %v202 = vunpack.c.h.b16 %v51
    %v203 = vunpack.c.l.b16 %v52
    %v204 = vunpack.c.h.b16 %v52
    %v205 = vunpack.c.l.b16 %v53
    %v206 = vunpack.c.h.b16 %v53
    %v207 = vunpack.c.l.b16 %v54
    %v208 = vunpack.c.h.b16 %v54
    %v209 = vpack.c.b16 %v201, %v193
    %v210 = vpack.c.b16 %v202, %v194
    %v211 = vpack.c.b16 %v203, %v195
    %v212 = vpack.c.b16 %v204, %v196
    %v213 = vpack.c.b16 %v205, %v197
    %v214 = vpack.c.b16 %v206, %v198
    %v215 = vpack.c.b16 %v207, %v199
    %v216 = vpack.c.b16 %v208, %v200
    %v353 = vunpack.c.l.b16 %v57
    %v354 = vunpack.c.l.b16 %v58
    %v355 = vunpack.c.l.b16 %v59
    %v356 = vunpack.c.l.b16 %v60
    %v357 = vunpack.c.l.b16 %v61
    %v358 = vunpack.c.l.b16 %v62
    %v359 = vunpack.c.l.b16 %v63
    %v360 = vunpack.c.l.b16 %v64
    %v361 = vunpack.c.l.b16 %v65
    %v362 = vunpack.c.l.b16 %v66
    %v363 = vunpack.c.l.b16 %v67
    %v364 = vunpack.c.l.b16 %v68
    %v365 = vunpack.c.l.b16 %v69
    %v366 = vunpack.c.l.b16 %v70
    %v367 = vunpack.c.l.b16 %v71
    %v368 = vunpack.c.l.b16 %v72
    %v369 = vunpack.c.l.b16 %v73
    %v370 = vunpack.c.l.b16 %v74
    %v371 = vunpack.c.l.b16 %v75
    %v372 = vunpack.c.l.b16 %v76
    %v373 = vunpack.c.l.b16 %v77
    %v374 = vunpack.c.l.b16 %v78
    %v375 = vunpack.c.l.b16 %v79
    %v376 = vunpack.c.l.b16 %v80
    %v377 = vunpack.c.l.b16 %v81
    %v378 = vunpack.c.l.b16 %v82
    %v379 = vunpack.c.l.b16 %v83
    %v380 = vunpack.c.l.b16 %v84
    %v381 = vunpack.c.l.b16 %v85
    %v382 = vunpack.c.l.b16 %v86
    %v383 = vunpack.c.l.b16 %v87
    %v384 = vunpack.c.l.b16 %v88
    %v385 = vunpack.c.l.b16 %v89
    %v386 = vunpack.c.l.b16 %v90
    %v387 = vunpack.c.l.b16 %v91
    %v388 = vunpack.c.l.b16 %v92
    %v389 = vunpack.c.l.b16 %v93
    %v390 = vunpack.c.l.b16 %v94
    %v391 = vunpack.c.l.b16 %v95
    %v392 = vunpack.c.l.b16 %v96
    %v393 = vunpack.c.l.b16 %v97
    %v394 = vunpack.c.l.b16 %v98
    %v395 = vunpack.c.l.b16 %v99
    %v396 = vunpack.c.l.b16 %v100
    %v397 = vunpack.c.l.b16 %v101
    %v398 = vunpack.c.l.b16 %v102
    %v399 = vunpack.c.l.b16 %v103
    %v400 = vunpack.c.l.b16 %v104
    %v401 = vunpack.c.l.b16 %v105
    %v402 = vunpack.c.l.b16 %v106
    %v403 = vunpack.c.l.b16 %v107
    %v404 = vunpack.c.l.b16 %v108
    %v405 = vunpack.c.l.b16 %v109
    %v406 = vunpack.c.l.b16 %v110
    %v407 = vunpack.c.l.b16 %v111
    %v408 = vunpack.c.l.b16 %v112
    %v409 = vunpack.c.l.b16 %v113
    %v410 = vunpack.c.l.b16 %v114
    %v411 = vunpack.c.l.b16 %v115
    %v412 = vunpack.c.l.b16 %v116
    %v413 = vunpack.c.l.b16 %v117
    %v414 = vunpack.c.l.b16 %v118
    %v415 = vunpack.c.l.b16 %v119
    %v416 = vunpack.c.l.b16 %v120
    %v417 = vunpack.c.l.b16 %v121
    %v418 = vunpack.c.l.b16 %v122
    %v419 = vunpack.c.l.b16 %v123
    %v420 = vunpack.c.l.b16 %v124
    %v421 = vunpack.c.l.b16 %v125
    %v422 = vunpack.c.l.b16 %v126
    %v423 = vunpack.c.l.b16 %v127
    %v424 = vunpack.c.l.b16 %v128
    %v425 = vunpack.c.l.b16 %v129
    %v426 = vunpack.c.l.b16 %v130
    %v427 = vunpack.c.l.b16 %v131
    %v428 = vunpack.c.l.b16 %v132
    %v429 = vunpack.c.l.b16 %v133
    %v430 = vunpack.c.l.b16 %v134
    %v431 = vunpack.c.l.b16 %v135
    %v432 = vunpack.c.l.b16 %v136
    %v433 = vunpack.c.l.b16 %v137
    %v434 = vunpack.c.l.b16 %v138
    %v435 = vunpack.c.l.b16 %v139
    %v436 = vunpack.c.l.b16 %v140
    %v437 = vunpack.c.l.b16 %v141
    %v438 = vunpack.c.l.b16 %v142
    %v439 = vunpack.c.l.b16 %v143
    %v440 = vunpack.c.l.b16 %v144
    %v441 = vunpack.c.l.b16 %v145
    %v442 = vunpack.c.l.b16 %v146
    %v443 = vunpack.c.l.b16 %v147
    %v444 = vunpack.c.l.b16 %v148
    %v445 = vunpack.c.l.b16 %v149
    %v446 = vunpack.c.l.b16 %v150
    %v447 = vunpack.c.l.b16 %v151
    %v448 = vunpack.c.l.b16 %v152
    %v449 = vunpack.c.l.b16 %v153
    %v450 = vunpack.c.l.b16 %v154
    %v451 = vunpack.c.l.b16 %v155
    %v452 = vunpack.c.l.b16 %v156
    %v453 = vunpack.c.l.b16 %v157
    %v454 = vunpack.c.l.b16 %v158
    %v455 = vunpack.c.l.b16 %v159
    %v456 = vunpack.c.l.b16 %v160
    %v457 = vunpack.c.l.b16 %v161
    %v458 = vunpack.c.l.b16 %v162
    %v459 = vunpack.c.l.b16 %v163
    %v460 = vunpack.c.l.b16 %v164
    %v461 = vunpack.c.l.b16 %v165
    %v462 = vunpack.c.l.b16 %v166
    %v463 = vunpack.c.l.b16 %v167
    %v464 = vunpack.c.l.b16 %v168
    %v465 = vunpack.c.l.b16 %v169
    %v466 = vunpack.c.l.b16 %v170
    %v467 = vunpack.c.l.b16 %v171
    %v468 = vunpack.c.l.b16 %v172
    %v469 = vunpack.c.l.b16 %v173
    %v470 = vunpack.c.l.b16 %v174
    %v471 = vunpack.c.l.b16 %v175
    %v472 = vunpack.c.l.b16 %v176
    %v473 = vunpack.c.l.b16 %v177
    %v474 = vunpack.c.l.b16 %v178
    %v475 = vunpack.c.l.b16 %v179
    %v476 = vunpack.c.l.b16 %v180
    %v477 = vunpack.c.l.b16 %v181
    %v478 = vunpack.c.l.b16 %v182
    %v479 = vunpack.c.l.b16 %v183
    %v480 = vunpack.c.l.b16 %v184
    %v481 = vpack.c.b16 %v354, %v353
    %v482 = vpack.c.b16 %v356, %v355
    %v483 = vpack.c.b16 %v358, %v357
    %v484 = vpack.c.b16 %v360, %v359
    %v485 = vpack.c.b16 %v362, %v361
    %v486 = vpack.c.b16 %v364, %v363
    %v487 = vpack.c.b16 %v366, %v365
    %v488 = vpack.c.b16 %v368, %v367
    %v489 = vpack.c.b16 %v370, %v369
    %v490 = vpack.c.b16 %v372, %v371
    %v491 = vpack.c.b16 %v374, %v373
    %v492 = vpack.c.b16 %v376, %v375
    %v493 = vpack.c.b16 %v378, %v377
    %v494 = vpack.c.b16 %v380, %v379
    %v495 = vpack.c.b16 %v382, %v381
    %v496 = vpack.c.b16 %v384, %v383
    %v497 = vpack.c.b16 %v386, %v385
    %v498 = vpack.c.b16 %v388, %v387
    %v499 = vpack.c.b16 %v390, %v389
    %v500 = vpack.c.b16 %v392, %v391
    %v501 = vpack.c.b16 %v394, %v393
    %v502 = vpack.c.b16 %v396, %v395
    %v503 = vpack.c.b16 %v398, %v397
    %v504 = vpack.c.b16 %v400, %v399
    %v505 = vpack.c.b16 %v402, %v401
    %v506 = vpack.c.b16 %v404, %v403
    %v507 = vpack.c.b16 %v406, %v405
    %v508 = vpack.c.b16 %v408, %v407
    %v509 = vpack.c.b16 %v410, %v409
    %v510 = vpack.c.b16 %v412, %v411
    %v511 = vpack.c.b16 %v414, %v413
    %v512 = vpack.c.b16 %v416, %v415
    %v513 = vpack.c.b16 %v418, %v417
    %v514 = vpack.c.b16 %v420, %v419
    %v515 = vpack.c.b16 %v422, %v421
    %v516 = vpack.c.b16 %v424, %v423
    %v517 = vpack.c.b16 %v426, %v425
    %v518 = vpack.c.b16 %v428, %v427
    %v519 = vpack.c.b16 %v430, %v429
    %v520 = vpack.c.b16 %v432, %v431
    %v521 = vpack.c.b16 %v434, %v433
    %v522 = vpack.c.b16 %v436, %v435
    %v523 = vpack.c.b16 %v438, %v437
    %v524 = vpack.c.b16 %v440, %v439
    %v525 = vpack.c.b16 %v442, %v441
    %v526 = vpack.c.b16 %v444, %v443
    %v527 = vpack.c.b16 %v446, %v445
    %v528 = vpack.c.b16 %v448, %v447
    %v529 = vpack.c.b16 %v450, %v449
    %v530 = vpack.c.b16 %v452, %v451
    %v531 = vpack.c.b16 %v454, %v453
    %v532 = vpack.c.b16 %v456, %v455
    %v533 = vpack.c.b16 %v458, %v457
    %v534 = vpack.c.b16 %v460, %v459
    %v535 = vpack.c.b16 %v462, %v461
    %v536 = vpack.c.b16 %v464, %v463
    %v537 = vpack.c.b16 %v466, %v465
    %v538 = vpack.c.b16 %v468, %v467
    %v539 = vpack.c.b16 %v470, %v469
    %v540 = vpack.c.b16 %v472, %v471
    %v541 = vpack.c.b16 %v474, %v473
    %v542 = vpack.c.b16 %v476, %v475
    %v543 = vpack.c.b16 %v478, %v477
    %v544 = vpack.c.b16 %v480, %v479
    %609 = vmatprep.subr.bf16.mxu0 0
    %610 = vmatpush1.bf16.msra.mxu0 %v488
    %611 = vmatprep.subr.bf16.mxu0 0
    %612 = vmatpush1.bf16.msra.mxu0 %v487
    %613 = vmatprep.subr.bf16.mxu0 0
    %614 = vmatpush1.bf16.msra.mxu0 %v486
    %615 = vmatprep.subr.bf16.mxu0 0
    %616 = vmatpush1.bf16.msra.mxu0 %v485
    %617 = vmatprep.subr.bf16.mxu0 0
    %618 = vmatpush1.bf16.msra.mxu0 %v484
    %619 = vmatprep.subr.bf16.mxu0 0
    %620 = vmatpush1.bf16.msra.mxu0 %v483
    %621 = vmatprep.subr.bf16.mxu0 0
    %622 = vmatpush1.bf16.msra.mxu0 %v482
    %623 = vmatprep.subr.bf16.mxu0 0
    %624 = vmatpush1.bf16.msra.mxu0 %v481
    %625 = vmatprep.subr.bf16.mxu0 0
    %626 = vmatpush2.bf16.msra.mxu0 %v496
    %627 = vmatprep.subr.bf16.mxu0 0
    %628 = vmatpush2.bf16.msra.mxu0 %v495
    %629 = vmatprep.subr.bf16.mxu0 0
    %630 = vmatpush2.bf16.msra.mxu0 %v494
    %631 = vmatprep.subr.bf16.mxu0 0
    %632 = vmatpush2.bf16.msra.mxu0 %v493
    %633 = vmatprep.subr.bf16.mxu0 0
    %634 = vmatpush2.bf16.msra.mxu0 %v492
    %635 = vmatprep.subr.bf16.mxu0 0
    %636 = vmatpush2.bf16.msra.mxu0 %v491
    %637 = vmatprep.subr.bf16.mxu0 0
    %638 = vmatpush2.bf16.msra.mxu0 %v490
    %639 = vmatprep.subr.bf16.mxu0 0
    %640 = vmatpush2.bf16.msra.mxu0 %v489
    %641 = vmatprep.mubr.bf16.mxu0 %v210
    %642 = vmatmul.mubr.bf16.gmra.mxu0 %v209
    %v643 = vpop.f32.mrf.mxu0
    %v644 = vadd.f32 0.0, %v643
    %v645 = vpop.f32.mrf.mxu0
    %v646 = vpop.f32.mrf.mxu0
    %v647 = vadd.f32 0.0, %v646
    %v648 = vpop.f32.mrf.mxu0
    %649 = vdwg.mxu0
    %650 = vmatprep.subr.bf16.mxu0 0
    %651 = vmatpush1.bf16.msra.mxu0 %v504
    %652 = vmatprep.subr.bf16.mxu0 0
    %653 = vmatpush1.bf16.msra.mxu0 %v503
    %654 = vmatprep.subr.bf16.mxu0 0
    %655 = vmatpush1.bf16.msra.mxu0 %v502
    %656 = vmatprep.subr.bf16.mxu0 0
    %657 = vmatpush1.bf16.msra.mxu0 %v501
    %658 = vmatprep.subr.bf16.mxu0 0
    %659 = vmatpush1.bf16.msra.mxu0 %v500
    %660 = vmatprep.subr.bf16.mxu0 0
    %661 = vmatpush1.bf16.msra.mxu0 %v499
    %662 = vmatprep.subr.bf16.mxu0 0
    %663 = vmatpush1.bf16.msra.mxu0 %v498
    %664 = vmatprep.subr.bf16.mxu0 0
    %665 = vmatpush1.bf16.msra.mxu0 %v497
    %666 = vmatprep.subr.bf16.mxu0 0
    %667 = vmatpush2.bf16.msra.mxu0 %v512
    %668 = vmatprep.subr.bf16.mxu0 0
    %669 = vmatpush2.bf16.msra.mxu0 %v511
    %670 = vmatprep.subr.bf16.mxu0 0
    %671 = vmatpush2.bf16.msra.mxu0 %v510
    %672 = vmatprep.subr.bf16.mxu0 0
    %673 = vmatpush2.bf16.msra.mxu0 %v509
    %674 = vmatprep.subr.bf16.mxu0 0
    %675 = vmatpush2.bf16.msra.mxu0 %v508
    %676 = vmatprep.subr.bf16.mxu0 0
    %677 = vmatpush2.bf16.msra.mxu0 %v507
    %678 = vmatprep.subr.bf16.mxu0 0
    %679 = vmatpush2.bf16.msra.mxu0 %v506
    %680 = vmatprep.subr.bf16.mxu0 0
    %681 = vmatpush2.bf16.msra.mxu0 %v505
    %682 = vmatprep.mubr.bf16.mxu0 %v212
    %683 = vmatmul.mubr.bf16.gmra.mxu0 %v211
    %v684 = vpop.f32.mrf.mxu0
    %v685 = vadd.f32 %v644, %v684
    %v686 = vpop.f32.mrf.mxu0
    %v687 = vpop.f32.mrf.mxu0
    %v688 = vadd.f32 %v647, %v687
    %v689 = vpop.f32.mrf.mxu0
    %690 = vdwg.mxu0
    %691 = vmatprep.subr.bf16.mxu0 0
    %692 = vmatpush1.bf16.msra.mxu0 %v520
    %693 = vmatprep.subr.bf16.mxu0 0
    %694 = vmatpush1.bf16.msra.mxu0 %v519
    %695 = vmatprep.subr.bf16.mxu0 0
    %696 = vmatpush1.bf16.msra.mxu0 %v518
    %697 = vmatprep.subr.bf16.mxu0 0
    %698 = vmatpush1.bf16.msra.mxu0 %v517
    %699 = vmatprep.subr.bf16.mxu0 0
    %700 = vmatpush1.bf16.msra.mxu0 %v516
    %701 = vmatprep.subr.bf16.mxu0 0
    %702 = vmatpush1.bf16.msra.mxu0 %v515
    %703 = vmatprep.subr.bf16.mxu0 0
    %704 = vmatpush1.bf16.msra.mxu0 %v514
    %705 = vmatprep.subr.bf16.mxu0 0
    %706 = vmatpush1.bf16.msra.mxu0 %v513
    %707 = vmatprep.subr.bf16.mxu0 0
    %708 = vmatpush2.bf16.msra.mxu0 %v528
    %709 = vmatprep.subr.bf16.mxu0 0
    %710 = vmatpush2.bf16.msra.mxu0 %v527
    %711 = vmatprep.subr.bf16.mxu0 0
    %712 = vmatpush2.bf16.msra.mxu0 %v526
    %713 = vmatprep.subr.bf16.mxu0 0
    %714 = vmatpush2.bf16.msra.mxu0 %v525
    %715 = vmatprep.subr.bf16.mxu0 0
    %716 = vmatpush2.bf16.msra.mxu0 %v524
    %717 = vmatprep.subr.bf16.mxu0 0
    %718 = vmatpush2.bf16.msra.mxu0 %v523
    %719 = vmatprep.subr.bf16.mxu0 0
    %720 = vmatpush2.bf16.msra.mxu0 %v522
    %721 = vmatprep.subr.bf16.mxu0 0
    %722 = vmatpush2.bf16.msra.mxu0 %v521
    %723 = vmatprep.mubr.bf16.mxu0 %v214
    %724 = vmatmul.mubr.bf16.gmra.mxu0 %v213
    %v725 = vpop.f32.mrf.mxu0
    %v726 = vadd.f32 %v685, %v725
    %v727 = vpop.f32.mrf.mxu0
    %v728 = vpop.f32.mrf.mxu0
    %v729 = vadd.f32 %v688, %v728
    %v730 = vpop.f32.mrf.mxu0
    %731 = vdwg.mxu0
    %732 = vmatprep.subr.bf16.mxu0 0
    %733 = vmatpush1.bf16.msra.mxu0 %v536
    %734 = vmatprep.subr.bf16.mxu0 0
    %735 = vmatpush1.bf16.msra.mxu0 %v535
    %736 = vmatprep.subr.bf16.mxu0 0
    %737 = vmatpush1.bf16.msra.mxu0 %v534
    %738 = vmatprep.subr.bf16.mxu0 0
    %739 = vmatpush1.bf16.msra.mxu0 %v533
    %740 = vmatprep.subr.bf16.mxu0 0
    %741 = vmatpush1.bf16.msra.mxu0 %v532
    %742 = vmatprep.subr.bf16.mxu0 0
    %743 = vmatpush1.bf16.msra.mxu0 %v531
    %744 = vmatprep.subr.bf16.mxu0 0
    %745 = vmatpush1.bf16.msra.mxu0 %v530
    %746 = vmatprep.subr.bf16.mxu0 0
    %747 = vmatpush1.bf16.msra.mxu0 %v529
    %748 = vmatprep.subr.bf16.mxu0 0
    %749 = vmatpush2.bf16.msra.mxu0 %v544
    %750 = vmatprep.subr.bf16.mxu0 0
    %751 = vmatpush2.bf16.msra.mxu0 %v543
    %752 = vmatprep.subr.bf16.mxu0 0
    %753 = vmatpush2.bf16.msra.mxu0 %v542
    %754 = vmatprep.subr.bf16.mxu0 0
    %755 = vmatpush2.bf16.msra.mxu0 %v541
    %756 = vmatprep.subr.bf16.mxu0 0
    %757 = vmatpush2.bf16.msra.mxu0 %v540
    %758 = vmatprep.subr.bf16.mxu0 0
    %759 = vmatpush2.bf16.msra.mxu0 %v539
    %760 = vmatprep.subr.bf16.mxu0 0
    %761 = vmatpush2.bf16.msra.mxu0 %v538
    %762 = vmatprep.subr.bf16.mxu0 0
    %763 = vmatpush2.bf16.msra.mxu0 %v537
    %764 = vmatprep.mubr.bf16.mxu0 %v216
    %765 = vmatmul.mubr.bf16.gmra.mxu0 %v215
    %v766 = vpop.f32.mrf.mxu0
    %v767 = vadd.f32 %v726, %v766
    %v768 = vpop.f32.mrf.mxu0
    %v769 = vpop.f32.mrf.mxu0
    %v770 = vadd.f32 %v729, %v769
    %v771 = vpop.f32.mrf.mxu0
    %772 = vdwg.mxu0
    %v773 = vadd.f32 %v55, %v767
    %v774 = vadd.f32 %v56, %v770
    %775 = vst [vmem:[#allocation2] sm:$0xff] %v773
    %776 = vst [vmem:[#allocation2 + $0x8] sm:$0xff] %v774
    // Predicated region
    $region30: #{forward.1} parent=1 // pred_check
      %p777 = pneg %p35
    $region31: #{forward.1} parent=1 // pred_check_branch
      %779 = sbr.rel (%p777) target = $region33
    $region32: #{forward.1} parent=1 // pred_region
      %v780 = vld [vmem:[#allocation2] sm:$0xff]
      %v781 = vld [vmem:[#allocation2 + $0x8] sm:$0xff]
      %v782 = vld [vmem:[%s2] sm:$0xff]
      %v783 = vld [vmem:[%s2 + $0x8] sm:$0xff]
      %v784 = vsub.f32 %v780, %v782
      %v785 = vsub.f32 %v781, %v783
      %v786 = vld [vmem:[%s4] sm:$0x1]
      %v787 = vld [vmem:[%s3] sm:$0x1]
      %v788 = vsub.f32 %v786, %v787
      %v789 = vlaneseq
      %v790 = vshrl.u32 %v789, 7
      %v791 = vadd.s32 %v790, 8
      %vm792 = vcmp.lt.s32.totalorder %v790, 2
      %vm793 = vcmp.lt.s32.totalorder %v791, 2
      %v794 = vsel %vm792, 1, 0
      %v795 = vsel %vm793, 1, 0
      %v796 = vcvt.s32.f32 %v794
      %v797 = vcvt.s32.f32 %v795
      %v799 = vlaneseq
      %v800 = vshrl.u32 %v799, 7
      %v801 = vsub.s32 0, %v800
      %v802 = vrot.slane %v788, %v801
      %v804 = vmul.f32 %v784, %v802
      %v805 = vmul.f32 %v785, %v802
      %806 = vadd.xlane.f32.xlu0 %v804
      %v807 = vpop.xlane.xlu0 %806
      %808 = vadd.xlane.f32.xlu0 %v805
      %v809 = vpop.xlane.xlu0 %808
      %v810 = vmul.f32 %v784, %v784
      %v811 = vmul.f32 %v785, %v785
      %812 = vadd.xlane.f32.xlu0 %v810
      %v813 = vpop.xlane.xlu0 %812
      %814 = vadd.xlane.f32.xlu0 %v811
      %v815 = vpop.xlane.xlu0 %814
      %v816 = vmul.f32 %v788, %v788
      %vm817 = vcmask 1040384
      %v818 = vsel %vm817, %v816, 0.0
      %819 = vadd.xlane.f32.xlu0 %v818
      %v820 = vpop.xlane.xlu0 %819
      %v821 = vmax.f32 %v813, 1e-16
      %v822 = vmax.f32 %v815, 1e-16
      %v823 = vrsqrt.pop %v821
      %v824 = vrsqrt.pop %v822
      %v825 = vmul.f32 %v807, %v823
      %v826 = vmul.f32 %v809, %v824
      %v827 = vmax.f32 %v820, 1e-16
      %v828 = vrsqrt.pop %v827
      %v829 = vlaneseq
      %v830 = vshrl.u32 %v829, 7
      %v831 = vsub.s32 0, %v830
      %v832 = vrot.slane %v828, %v831
      %v833 = vmul.f32 %v825, %v832
      %v834 = vmul.f32 %v826, %v832
      %v835 = vsub.f32 1.0, %v833
      %v836 = vsub.f32 1.0, %v834
      %v837 = vmul.f32 %v835, %v796
      %v838 = vmul.f32 %v836, %v797
      %v839 = vadd.f32 %v837, %v838
      %v840 = vrot.slane %v839, 4
      %v841 = vadd.f32 %v839, %v840
      %v842 = vrot.slane %v841, 2
      %v843 = vadd.f32 %v841, %v842
      %v844 = vrot.slane %v843, 1
      %v845 = vadd.f32 %v843, %v844
      %v846 = vmul.f32 %v845, 0.5
      %v847 = vlaneseq
      %v848 = vand.u32 %v847, 127
      %vm849 = vcmp.eq.s32.totalorder %v848, 0
      %v850 = vsel %vm849, %v846, 0.0
      %851 = vst [vmem:[%s5] sm:$0x1] %v850
    $region33: #{forward.1} parent=1 // pred_fallthru
      _
    // Predicated region
    $region34: #{forward.1} parent=1 // pred_check
      _
    $region35: #{forward.1} parent=1 // pred_check_branch
      %853 = sbr.rel (0) target = $region37
    $region36: #{forward.1} parent=1 // pred_region
      _
    $region37: #{forward.1} parent=1 // pred_fallthru
      _
    // Predicated region
    $region38: #{forward.1} parent=1 // pred_check
      _
    $region39: #{forward.1} parent=1 // pred_check_branch
      %855 = sbr.rel (0) target = $region41
    $region40: #{forward.1} parent=1 // pred_region
      _
    $region41: #{forward.1} parent=1 // pred_fallthru
      _
    %856 = vsyncpa [#allocation4], 1

</llo_original>
